<compile_context>
chip_gen: v7x
topology: tpu7x:2x2x1
jax: 0.10.0
libtpu: 0.0.40
codegen_flags: <defaults>
</compile_context>

<pallas_src>
import math
from functools import partial

import numpy as np
import jax
import jax.numpy as jnp
from jax import lax
from jax.experimental import pallas as pl
from jax.experimental.pallas import tpu as pltpu

LN_EPS = 1e-5  # nn.LayerNorm default


# -----------------------------------------------------------------------------
# Generation-aware sizing helpers
# -----------------------------------------------------------------------------
def _vmem_limit_bytes():
    """Scoped-VMEM limit per generation (v7x 64 MiB phys -> 48 MiB; v5e/v6e -> 96 MiB)."""
    try:
        cap = int(pltpu.get_tpu_info().vmem_capacity_bytes)
    except Exception:
        cap = 64 * 1024 * 1024                       # conservative (v7x) default
    return min((cap * 3) // 4, 100 * 1024 * 1024)


def _two_tensorcore_chip():
    """Best-effort detection of chips with 2 TensorCores per device (v4/v5p/v7x)."""
    try:
        kind = jax.devices()[0].device_kind.lower()
    except Exception:
        return False
    return any(tag in kind for tag in ("v4", "v5p", "v7", "7x"))


def _choose_tb(batch, n_num, n_cat, seq, hp, vmem_limit):
    """Batch rows per grid step: cat-matmul M >= 256 under a per-generation VMEM cap."""
    f = n_num + n_cat
    tb = max(1, -(-256 // max(n_cat, 1)))                         # M = tb*n_cat >= 256
    per_tb = 3 * f * hp * 4 + n_cat * hp * 4 + 2 * n_cat * seq * 4
    fixed = 2 * hp * hp * 4 + 8 * 1024 * 1024                     # align W + gather buffers
    avail = max(per_tb, vmem_limit // 2 - fixed)
    tb = min(tb, max(1, avail // per_tb))
    tb = min(tb, batch)
    if batch >= 2:                                                # >= 2 grid steps
        tb = min(tb, -(-batch // 2))
    return max(tb, 1)


def _choose_gpc(tb, n_cat, seq, hp):
    """Feature groups per gather chunk: divides n_cat, <=256 token rows, <=4 MiB/slot,
    and >=2 chunks per block whenever possible (so gather overlaps compute)."""
    cap = min(max(1, 256 // max(seq, 1)),
              max(1, (4 * 1024 * 1024) // max(1, seq * hp * 4)))
    if tb == 1 and n_cat >= 2:
        cap = min(cap, n_cat // 2)
    cap = max(1, min(cap, n_cat))
    for g in range(cap, 0, -1):
        if n_cat % g == 0:
            return g
    return 1


# -----------------------------------------------------------------------------
# Pallas kernel: CM2FeatureProcessor hot path, one batch block per grid step
# -----------------------------------------------------------------------------
def _cm2_kernel(ids_ref,        # SMEM scalar prefetch: flattened cat token ids (B_pad*n_cat*S,)
                emb_ref,        # HBM (ANY): padded word-embedding table (V, Hp)
                cat_mask_ref,   # (TB*spb, gpc, S) float mask, chunk-major layout
                x_num_ref,      # (TB, n_num, 1)   numeric values
                num_col_ref,    # (n_num, Hp)      hoisted LN+masked-avg numeric columns
                num_bias_ref,   # (1, Hp)          CM2NumEmbedding.num_bias
                ln_w_ref,       # (1, Hp)          word-embedding LayerNorm weight (zero-padded)
                ln_b_ref,       # (1, Hp)          word-embedding LayerNorm bias   (zero-padded)
                wt_ref,         # (Hp, Hp)         align Linear weight, pre-transposed & padded
                out_ref,        # (TB, F, Hp)
                gbuf,           # VMEM (2, gpc*S, Hp): double-buffered gathered token rows
                cat_pre_ref,    # VMEM (n_chunks, gpc, Hp): masked-avg categorical embeddings
                sem,            # DMA semaphores (2,)
                *, tb, n_num, n_cat, seq, h, hp, gpc):
    spb = n_cat // gpc                        # gather chunks per batch row
    n_chunks = tb * spb
    rows = gpc * seq                          # token rows gathered per chunk (<= 256)
    base = pl.program_id(0) * (tb * n_cat * seq)

    def start_chunk(c, slot):
        """Issue the row-gather DMAs for chunk c into gbuf[slot] (bounded outstanding)."""
        row0 = base + c * rows

        @pl.loop(0, rows)
        def _(r):
            tok = ids_ref[row0 + r]
            pltpu.make_async_copy(emb_ref.at[pl.ds(tok, 1), :],
                                  gbuf.at[slot, pl.ds(r, 1), :],
                                  sem.at[slot]).start()

    def wait_chunk(slot):
        # Single aggregate wait: DMA semaphores count bytes, so one descriptor sized to the
        # whole chunk balances the `rows` single-row starts issued above.
        pltpu.make_async_copy(gbuf.at[slot], gbuf.at[slot], sem.at[slot]).wait()

    # Prime chunk 0, then run the (tiny) numeric path while its gather is in flight.
    start_chunk(0, 0)

    if n_num > 0:
        num_pre = num_col_ref[...][None, :, :] * x_num_ref[...] + num_bias_ref[0, :]
        num_al = jnp.dot(num_pre.reshape(tb * n_num, hp), wt_ref[...],
                         preferred_element_type=jnp.float32)
        out_ref[:, pl.ds(0, n_num), :] = num_al.reshape(tb, n_num, hp)

    ln_w = ln_w_ref[0, :]
    ln_b = ln_b_ref[0, :]
    inv_h = 1.0 / h
    lane_ok = None
    if hp != h:   # padded lanes hold zeros; exclude them from the variance
        lane_ok = (lax.broadcasted_iota(jnp.int32, (1, hp), 1) < h).astype(jnp.float32)

    @pl.loop(0, n_chunks)
    def _(c):
        slot = c & 1

        @pl.when(c + 1 < n_chunks)
        def _():
            start_chunk(c + 1, (c + 1) & 1)   # overlap next gather with this chunk's compute

        wait_chunk(slot)

        # LayerNorm over the real H lanes (zero-padded lanes contribute 0 to the mean,
        # are masked out of the variance, and end up 0 via the zero-padded ln_w/ln_b).
        x = gbuf[slot]                                            # (rows, Hp)
        mu = jnp.sum(x, axis=-1, keepdims=True) * inv_h
        d = x - mu
        if lane_ok is None:
            var = jnp.sum(d * d, axis=-1, keepdims=True) * inv_h
        else:
            var = jnp.sum(d * d * lane_ok, axis=-1, keepdims=True) * inv_h
        tok = d * lax.rsqrt(var + LN_EPS) * ln_w + ln_b           # (rows, Hp)

        # Masked average over the token axis for this chunk's gpc feature strings.
        tok = tok.reshape(gpc, seq, hp)
        mask = cat_mask_ref[c]                                    # (gpc, S)
        denom = jnp.maximum(jnp.sum(mask, axis=1, keepdims=True), 1.0)
        cat_pre_ref[c] = jnp.sum(tok * mask[:, :, None], axis=1) / denom

    # One MXU matmul over all categorical features of the block, lane-dense slab store.
    cat_al = jnp.dot(cat_pre_ref[...].reshape(tb * n_cat, hp), wt_ref[...],
                     preferred_element_type=jnp.float32)
    out_ref[:, pl.ds(n_num, n_cat), :] = cat_al.reshape(tb, n_cat, hp)


# -----------------------------------------------------------------------------
# Wrapper = CM2InputEncoder.forward (feature_processor part)
# -----------------------------------------------------------------------------
def cm2_input_encoder_forward(params, tokenized, block_batch=None):
    x_num = tokenized["x_num"].astype(jnp.float32)                 # (B, N_num)
    num_ids = tokenized["num_col_input_ids"]                       # (N_num, S)
    num_mask = tokenized["num_att_mask"].astype(jnp.float32)       # (N_num, S)
    cat_ids = tokenized["x_cat_input_ids"].astype(jnp.int32)       # (B, N_cat, S)
    cat_mask = tokenized["cat_att_mask"].astype(jnp.float32)       # (B, N_cat, S)

    emb = params["word_emb"].astype(jnp.float32)                   # (V, H)
    V, H = emb.shape
    B, n_num = x_num.shape
    n_cat, S = cat_ids.shape[1], cat_ids.shape[2]
    F = n_num + n_cat
    Hp = ((H + 127) // 128) * 128                                  # lane-dense hidden dim

    vmem_limit = _vmem_limit_bytes()
    TB = block_batch or _choose_tb(B, n_num, n_cat, S, Hp, vmem_limit)
    n_blocks = -(-B // TB)
    if _two_tensorcore_chip() and n_blocks > 1 and n_blocks % 2 == 1:
        n_blocks += 1                                              # even grid for 2-TC chips
    B_pad = n_blocks * TB

    gpc = _choose_gpc(TB, n_cat, S, Hp)                            # feature groups per chunk
    spb = n_cat // gpc                                             # chunks per batch row
    n_chunks = TB * spb

    # ---- batch-invariant numeric-column precompute (tiny; hoisted out of the grid) ----
    ln_w, ln_b = params["ln_w"], params["ln_b"]
    num_tok = jnp.take(emb, num_ids, axis=0)                       # (N_num, S, H)
    mu = num_tok.mean(-1, keepdims=True)
    var = ((num_tok - mu) ** 2).mean(-1, keepdims=True)
    num_tok = (num_tok - mu) / jnp.sqrt(var + LN_EPS) * ln_w + ln_b
    num_den = jnp.maximum(num_mask.sum(1, keepdims=True), 1.0)
    num_col = (num_tok * num_mask[..., None]).sum(1) / num_den     # (N_num, H)

    # ---- pad hidden dim to Hp with zeros (zero W rows/cols keep the math exact) ----
    def pad_h(a):
        return jnp.zeros(a.shape[:-1] + (Hp,), jnp.float32).at[..., :H].set(a)

    emb_p = pad_h(emb)                                             # (V, Hp)
    num_col_p = pad_h(num_col)                                     # (N_num, Hp)
    num_bias_p = pad_h(params["num_bias"]).reshape(1, Hp)
    ln_w_p = pad_h(ln_w).reshape(1, Hp)
    ln_b_p = pad_h(ln_b).reshape(1, Hp)
    wt_p = jnp.zeros((Hp, Hp), jnp.float32).at[:H, :H].set(params["align_w"].T)

    # ---- pad batch to a multiple of the batch block (padded rows sliced off) ----
    def pad_b(a):
        if B_pad == B:
            return a
        pad = jnp.zeros((B_pad - B,) + a.shape[1:], a.dtype)
        return jnp.concatenate([a, pad], axis=0)

    x_num_p = pad_b(x_num).reshape(B_pad, n_num, 1)
    cat_ids_flat = pad_b(cat_ids).reshape(-1)                      # gather indices (SMEM)
    cat_mask_p = pad_b(cat_mask).reshape(B_pad * spb, gpc, S)      # chunk-major mask layout

    kernel = partial(_cm2_kernel, tb=TB, n_num=n_num, n_cat=n_cat,
                     seq=S, h=H, hp=Hp, gpc=gpc)

    grid_spec = pltpu.PrefetchScalarGridSpec(
        num_scalar_prefetch=1,                                      # cat token ids -> SMEM
        grid=(n_blocks,),
        in_specs=[
            pl.BlockSpec(memory_space=pl.ANY),                           # word_emb stays in HBM
            pl.BlockSpec((TB * spb, gpc, S), lambda i, ids: (i, 0, 0)),  # cat att mask
            pl.BlockSpec((TB, n_num, 1), lambda i, ids: (i, 0, 0)),      # x_num
            pl.BlockSpec((n_num, Hp), lambda i, ids: (0, 0)),            # hoisted numeric cols
            pl.BlockSpec((1, Hp), lambda i, ids: (0, 0)),                # num_bias
            pl.BlockSpec((1, Hp), lambda i, ids: (0, 0)),                # ln_w
            pl.BlockSpec((1, Hp), lambda i, ids: (0, 0)),                # ln_b
            pl.BlockSpec((Hp, Hp), lambda i, ids: (0, 0)),               # align W.T
        ],
        out_specs=pl.BlockSpec((TB, F, Hp), lambda i, ids: (i, 0, 0)),
        scratch_shapes=[
            pltpu.VMEM((2, gpc * S, Hp), jnp.float32),               # double-buffered gather
            pltpu.VMEM((n_chunks, gpc, Hp), jnp.float32),            # masked-avg cat features
            pltpu.SemaphoreType.DMA((2,)),
        ],
    )

    out = pl.pallas_call(
        kernel,
        out_shape=jax.ShapeDtypeStruct((B_pad, F, Hp), jnp.float32),
        grid_spec=grid_spec,
        compiler_params=pltpu.CompilerParams(
            dimension_semantics=("parallel",),            # independent batch blocks
            vmem_limit_bytes=vmem_limit,                  # generation-aware scoped limit
        ),
    )(cat_ids_flat, emb_p, cat_mask_p, x_num_p, num_col_p, num_bias_p,
      ln_w_p, ln_b_p, wt_p)

    embedding = out[:B, :, :H]
    attention_mask = jnp.ones((B, F), jnp.float32)
    return {"embedding": embedding, "attention_mask": attention_mask}


# -----------------------------------------------------------------------------
# Pure-JAX reference (mirrors the PyTorch feature_processor math)
# -----------------------------------------------------------------------------
def cm2_input_encoder_reference(params, tokenized):
    emb_table = params["word_emb"]

    def ln(x):
        mu = x.mean(-1, keepdims=True)
        var = ((x - mu) ** 2).mean(-1, keepdims=True)
        return (x - mu) / jnp.sqrt(var + LN_EPS) * params["ln_w"] + params["ln_b"]

    num_mask = tokenized["num_att_mask"].astype(jnp.float32)
    num_tok = ln(jnp.take(emb_table, tokenized["num_col_input_ids"], axis=0))
    num_col = (num_tok * num_mask[..., None]).sum(1) / num_mask.sum(1, keepdims=True)
    x_num = tokenized["x_num"].astype(jnp.float32)
    num_feat = num_col[None] * x_num[..., None] + params["num_bias"]
    num_feat = num_feat @ params["align_w"].T

    cat_mask = tokenized["cat_att_mask"].astype(jnp.float32)
    cat_tok = ln(jnp.take(emb_table, tokenized["x_cat_input_ids"], axis=0))
    cat_feat = (cat_tok * cat_mask[..., None]).sum(2) / cat_mask.sum(2, keepdims=True)
    cat_feat = cat_feat @ params["align_w"].T

    emb = jnp.concatenate([num_feat, cat_feat], axis=1).astype(jnp.float32)
    return {"embedding": emb, "attention_mask": jnp.ones(emb.shape[:2], jnp.float32)}


if __name__ == "__main__":
    # Small deterministic config (B=4 so the batch-blocked grid has 2 steps and the
    # chunked gather loop has >=2 chunks, exercising the overlap path).
    B, N_NUM, N_CAT, S, H, V = 4, 4, 4, 8, 32, 64
    PAD = 0

    key = jax.random.PRNGKey(0)
    k_emb, k_bias, k_align, k_xnum, k_nids, k_cids = jax.random.split(key, 6)

    # ---- deterministic parameter init (shapes from the module __init__s) ----
    word_emb = 0.02 * jax.random.normal(k_emb, (V, H), jnp.float32)
    word_emb = word_emb.at[PAD].set(0.0)                      # nn.Embedding(padding_idx=0)
    params = {
        "word_emb": word_emb,
        "ln_w": jnp.ones((H,), jnp.float32),                  # LayerNorm defaults
        "ln_b": jnp.zeros((H,), jnp.float32),
        "num_bias": jax.random.uniform(k_bias, (H,), jnp.float32,
                                       -1.0 / math.sqrt(H), 1.0 / math.sqrt(H)),
        "align_w": jax.random.uniform(k_align, (H, H), jnp.float32,
                                      -1.0 / math.sqrt(H), 1.0 / math.sqrt(H)),
    }

    # ---- synthetic "feature_extractor" output (pre-tokenized) ----
    # TODO(synk): the real CM2FeatureExtractor runs a BERT WordPiece tokenizer on a
    # pandas DataFrame (string ops) — no Pallas/JAX equivalent, so we start from ids.
    num_lens = jnp.array([3, 5, 8, 2], jnp.int32)
    num_att_mask = (jnp.arange(S)[None, :] < num_lens[:, None]).astype(jnp.int32)
    num_ids = jax.random.randint(k_nids, (N_NUM, S), 1, V)
    num_ids = jnp.where(num_att_mask > 0, num_ids, PAD)

    cat_lens = (1 + jax.random.randint(k_cids, (B, N_CAT), 0, S)).astype(jnp.int32)
    cat_att_mask = (jnp.arange(S)[None, None, :] < cat_lens[:, :, None]).astype(jnp.int32)
    cat_ids = jax.random.randint(jax.random.fold_in(k_cids, 1), (B, N_CAT, S), 1, V)
    cat_ids = jnp.where(cat_att_mask > 0, cat_ids, PAD)

    tokenized = {
        "x_num": jax.random.normal(k_xnum, (B, N_NUM), jnp.float32),
        "num_col_input_ids": num_ids,
        "num_att_mask": num_att_mask,
        "x_cat_input_ids": cat_ids,
        "cat_att_mask": cat_att_mask,
    }

    out = cm2_input_encoder_forward(params, tokenized)
    jax.block_until_ready(out["embedding"])

    ref = cm2_input_encoder_reference(params, tokenized)
    np.testing.assert_allclose(np.asarray(out["embedding"]),
                               np.asarray(ref["embedding"]), rtol=1e-4, atol=1e-5)
    np.testing.assert_allclose(np.asarray(out["attention_mask"]),
                               np.asarray(ref["attention_mask"]))
    assert out["embedding"].shape == (B, N_NUM + N_CAT, H)
    assert out["embedding"].dtype == jnp.float32

    print("KERNEL_OK")
</pallas_src>

<mosaic_0001>
module attributes {stable_mosaic.version = 11 : i64} {
  func.func @_cm2_kernel(%arg0: i32, %arg1: memref<128xi32, #tpu.memory_space<smem>>, %arg2: memref<64x128xf32, #tpu.memory_space<any>>, %arg3: memref<2x4x8xf32, #tpu.memory_space<vmem>>, %arg4: memref<2x4x1xf32, #tpu.memory_space<vmem>>, %arg5: memref<4x128xf32, #tpu.memory_space<vmem>>, %arg6: memref<1x128xf32, #tpu.memory_space<vmem>>, %arg7: memref<1x128xf32, #tpu.memory_space<vmem>>, %arg8: memref<1x128xf32, #tpu.memory_space<vmem>>, %arg9: memref<128x128xf32, #tpu.memory_space<vmem>>, %arg10: memref<2x8x128xf32, #tpu.memory_space<vmem>>, %arg11: memref<2x32x128xf32, #tpu.memory_space<vmem>>, %arg12: memref<2x4x128xf32, #tpu.memory_space<vmem>>, %arg13: memref<2x!tpu.dma_semaphore, #tpu.memory_space<semaphore_mem>>) attributes {dimension_semantics = [#tpu.dimension_semantics<parallel>], iteration_bounds = array<i64: 2>, scalar_prefetch = 1 : i64, scratch_operands = 3 : i64, tpu.core_type = #tpu.core_type<tc>, window_params = [{}, {transform_indices = @transform_1, window_bounds = array<i64: 2, 4, 8>}, {transform_indices = @transform_2, window_bounds = array<i64: 2, 4, 1>}, {pipeline_mode = #tpu.pipeline_mode<synchronous>, transform_indices = @transform_3, window_bounds = array<i64: 4, 128>}, {pipeline_mode = #tpu.pipeline_mode<synchronous>, transform_indices = @transform_4, window_bounds = array<i64: 1, 128>}, {pipeline_mode = #tpu.pipeline_mode<synchronous>, transform_indices = @transform_5, window_bounds = array<i64: 1, 128>}, {pipeline_mode = #tpu.pipeline_mode<synchronous>, transform_indices = @transform_6, window_bounds = array<i64: 1, 128>}, {pipeline_mode = #tpu.pipeline_mode<synchronous>, transform_indices = @transform_7, window_bounds = array<i64: 128, 128>}, {transform_indices = @transform_8, window_bounds = array<i64: 2, 8, 128>}]} {
    %c64_i32 = arith.constant 64 : i32
    %0 = arith.muli %arg0, %c64_i32 : i32
    %c0_i32 = arith.constant 0 : i32
    %1 = arith.addi %0, %c0_i32 : i32
    %c0_i32_0 = arith.constant 0 : i32
    %c32_i32 = arith.constant 32 : i32
    %2 = arith.addi %c0_i32_0, %c32_i32 : i32
    %c1_i32 = arith.constant 1 : i32
    scf.for %arg14 = %c0_i32_0 to %2 step %c1_i32  : i32 {
      %c1_i32_29 = arith.constant 1 : i32
      %35 = arith.muli %arg14, %c1_i32_29 : i32
      %c0_i32_30 = arith.constant 0 : i32
      %36 = arith.addi %c0_i32_30, %35 : i32
      %37 = arith.addi %1, %36 : i32
      %38 = arith.index_cast %37 : i32 to index
      %39 = memref.load %arg1[%38] : memref<128xi32, #tpu.memory_space<smem>>
      %c0_i32_31 = arith.constant 0 : i32
      %c0_i32_32 = arith.constant 0 : i32
      %c0_i32_33 = arith.constant 0 : i32
      %40 = tpu.memref_slice %arg2[%39, %c0_i32_33] : memref<64x128xf32, #tpu.memory_space<any>> -> memref<1x128xf32, #tpu.memory_space<any>>
      %c0_i32_34 = arith.constant 0 : i32
      %41 = tpu.memref_slice %arg11[%c0_i32_31, %36, %c0_i32_34] : memref<2x32x128xf32, #tpu.memory_space<vmem>> -> memref<1x1x128xf32, #tpu.memory_space<vmem>>
      %42 = tpu.memref_squeeze %41 : memref<1x1x128xf32, #tpu.memory_space<vmem>> -> memref<1x128xf32, #tpu.memory_space<vmem>>
      %43 = tpu.memref_slice %arg13[%c0_i32_32] : memref<2x!tpu.dma_semaphore, #tpu.memory_space<semaphore_mem>> -> memref<1x!tpu.dma_semaphore, #tpu.memory_space<semaphore_mem>>
      %44 = tpu.memref_squeeze %43 : memref<1x!tpu.dma_semaphore, #tpu.memory_space<semaphore_mem>> -> memref<!tpu.dma_semaphore, #tpu.memory_space<semaphore_mem>>
      tpu.enqueue_dma source(%40 : memref<1x128xf32, #tpu.memory_space<any>>) target(%42 : memref<1x128xf32, #tpu.memory_space<vmem>>) target_semaphore(%44 : memref<!tpu.dma_semaphore, #tpu.memory_space<semaphore_mem>>)
    }
    %c32_i32_1 = arith.constant 32 : i32
    %c0 = arith.constant 0 : index
    %c0_2 = arith.constant 0 : index
    %3 = vector.load %arg5[%c0, %c0_2] : memref<4x128xf32, #tpu.memory_space<vmem>>, vector<4x128xf32>
    %4 = vector.shape_cast %3 : vector<4x128xf32> to vector<1x4x128xf32>
    %c0_3 = arith.constant 0 : index
    %c0_4 = arith.constant 0 : index
    %c0_5 = arith.constant 0 : index
    %5 = vector.load %arg4[%c0_3, %c0_4, %c0_5] : memref<2x4x1xf32, #tpu.memory_space<vmem>>, vector<2x4x1xf32>
    %6 = vector.broadcast %4 : vector<1x4x128xf32> to vector<2x4x128xf32>
    %7 = vector.broadcast %5 : vector<2x4x1xf32> to vector<2x4x128xf32>
    %8 = arith.mulf %6, %7 : vector<2x4x128xf32>
    %c0_6 = arith.constant 0 : index
    %c0_7 = arith.constant 0 : index
    %9 = vector.load %arg6[%c0_6, %c0_7] : memref<1x128xf32, #tpu.memory_space<vmem>>, vector<1x128xf32>
    %10 = vector.shape_cast %9 : vector<1x128xf32> to vector<128xf32>
    %11 = vector.shape_cast %10 : vector<128xf32> to vector<1x1x128xf32>
    %12 = vector.broadcast %11 : vector<1x1x128xf32> to vector<2x4x128xf32>
    %13 = arith.addf %8, %12 : vector<2x4x128xf32>
    %14 = vector.shape_cast %13 : vector<2x4x128xf32> to vector<8x128xf32>
    %c0_8 = arith.constant 0 : index
    %c0_9 = arith.constant 0 : index
    %15 = vector.load %arg9[%c0_8, %c0_9] : memref<128x128xf32, #tpu.memory_space<vmem>>, vector<128x128xf32>
    %cst = arith.constant dense<0.000000e+00> : vector<8x128xf32>
    %16 = tpu.matmul %14, %15, %cst {dimension_numbers = #tpu.dot_dimension_numbers<[1], [0], [0], [1], [0, 0, 1, 1], [], []>} : vector<8x128xf32>, vector<128x128xf32>, vector<8x128xf32> -> vector<8x128xf32>
    %17 = vector.shape_cast %16 : vector<8x128xf32> to vector<2x4x128xf32>
    %c0_10 = arith.constant 0 : index
    %c0_11 = arith.constant 0 : index
    %c0_12 = arith.constant 0 : index
    %18 = vector.load %arg10[%c0_10, %c0_11, %c0_12] : memref<2x8x128xf32, #tpu.memory_space<vmem>>, vector<2x4x128xf32>
    tpu.vector_store %arg10[%c0_10, %c0_11, %c0_12], %17 {strides = array<i32>} : memref<2x8x128xf32, #tpu.memory_space<vmem>>, vector<2x4x128xf32>,
    %c0_13 = arith.constant 0 : index
    %c0_14 = arith.constant 0 : index
    %19 = vector.load %arg7[%c0_13, %c0_14] : memref<1x128xf32, #tpu.memory_space<vmem>>, vector<1x128xf32>
    %20 = vector.shape_cast %19 : vector<1x128xf32> to vector<128xf32>
    %c0_15 = arith.constant 0 : index
    %c0_16 = arith.constant 0 : index
    %21 = vector.load %arg8[%c0_15, %c0_16] : memref<1x128xf32, #tpu.memory_space<vmem>>, vector<1x128xf32>
    %22 = vector.shape_cast %21 : vector<1x128xf32> to vector<128xf32>
    %23 = tpu.iota {dimensions = array<i32: 1>} : vector<1x128xi32>
    %c32_i32_17 = arith.constant 32 : i32
    %24 = vector.broadcast %c32_i32_17 : i32 to vector<1x128xi32>
    %25 = arith.cmpi slt, %23, %24 : vector<1x128xi32>
    %26 = arith.extui %25 : vector<1x128xi1> to vector<1x128xi32>
    %27 = arith.sitofp %26 : vector<1x128xi32> to vector<1x128xf32>
    %c0_i32_18 = arith.constant 0 : i32
    %c2_i32 = arith.constant 2 : i32
    %28 = arith.addi %c0_i32_18, %c2_i32 : i32
    %c1_i32_19 = arith.constant 1 : i32
    scf.for %arg14 = %c0_i32_18 to %28 step %c1_i32_19  : i32 {
      %c1_i32_29 = arith.constant 1 : i32
      %35 = arith.muli %arg14, %c1_i32_29 : i32
      %c0_i32_30 = arith.constant 0 : i32
      %36 = arith.addi %c0_i32_30, %35 : i32
      %c1_i32_31 = arith.constant 1 : i32
      %37 = arith.andi %36, %c1_i32_31 : i32
      %c1_i32_32 = arith.constant 1 : i32
      %38 = arith.addi %36, %c1_i32_32 : i32
      %c2_i32_33 = arith.constant 2 : i32
      %39 = arith.cmpi slt, %38, %c2_i32_33 : i32
      %40 = arith.extui %39 : i1 to i32
      %c0_i32_34 = arith.constant 0 : i32
      %41 = arith.cmpi ne, %40, %c0_i32_34 : i32
      scf.if %41 {
        %c1_i32_53 = arith.constant 1 : i32
        %93 = arith.addi %36, %c1_i32_53 : i32
        %c1_i32_54 = arith.constant 1 : i32
        %94 = arith.addi %36, %c1_i32_54 : i32
        %c1_i32_55 = arith.constant 1 : i32
        %95 = arith.andi %94, %c1_i32_55 : i32
        %c32_i32_56 = arith.constant 32 : i32
        %96 = arith.muli %93, %c32_i32_56 : i32
        %97 = arith.addi %0, %96 : i32
        %c0_i32_57 = arith.constant 0 : i32
        %c32_i32_58 = arith.constant 32 : i32
        %98 = arith.addi %c0_i32_57, %c32_i32_58 : i32
        %c1_i32_59 = arith.constant 1 : i32
        scf.for %arg15 = %c0_i32_57 to %98 step %c1_i32_59  : i32 {
          %c1_i32_61 = arith.constant 1 : i32
          %99 = arith.muli %arg15, %c1_i32_61 : i32
          %c0_i32_62 = arith.constant 0 : i32
          %100 = arith.addi %c0_i32_62, %99 : i32
          %101 = arith.addi %97, %100 : i32
          %102 = arith.index_cast %101 : i32 to index
          %103 = memref.load %arg1[%102] : memref<128xi32, #tpu.memory_space<smem>>
          %c0_i32_63 = arith.constant 0 : i32
          %104 = tpu.memref_slice %arg2[%103, %c0_i32_63] : memref<64x128xf32, #tpu.memory_space<any>> -> memref<1x128xf32, #tpu.memory_space<any>>
          %c0_i32_64 = arith.constant 0 : i32
          %105 = tpu.memref_slice %arg11[%95, %100, %c0_i32_64] : memref<2x32x128xf32, #tpu.memory_space<vmem>> -> memref<1x1x128xf32, #tpu.memory_space<vmem>>
          %106 = tpu.memref_squeeze %105 : memref<1x1x128xf32, #tpu.memory_space<vmem>> -> memref<1x128xf32, #tpu.memory_space<vmem>>
          %107 = tpu.memref_slice %arg13[%95] : memref<2x!tpu.dma_semaphore, #tpu.memory_space<semaphore_mem>> -> memref<1x!tpu.dma_semaphore, #tpu.memory_space<semaphore_mem>>
          %108 = tpu.memref_squeeze %107 : memref<1x!tpu.dma_semaphore, #tpu.memory_space<semaphore_mem>> -> memref<!tpu.dma_semaphore, #tpu.memory_space<semaphore_mem>>
          tpu.enqueue_dma source(%104 : memref<1x128xf32, #tpu.memory_space<any>>) target(%106 : memref<1x128xf32, #tpu.memory_space<vmem>>) target_semaphore(%108 : memref<!tpu.dma_semaphore, #tpu.memory_space<semaphore_mem>>)
        }
        %c32_i32_60 = arith.constant 32 : i32
      } else {
      }
      %c0_i32_35 = arith.constant 0 : i32
      %c0_i32_36 = arith.constant 0 : i32
      %42 = tpu.memref_slice %arg11[%37, %c0_i32_35, %c0_i32_36] : memref<2x32x128xf32, #tpu.memory_space<vmem>> -> memref<1x32x128xf32, #tpu.memory_space<vmem>>
      %43 = tpu.memref_squeeze %42 : memref<1x32x128xf32, #tpu.memory_space<vmem>> -> memref<32x128xf32, #tpu.memory_space<vmem>>
      %c0_i32_37 = arith.constant 0 : i32
      %c0_i32_38 = arith.constant 0 : i32
      %44 = tpu.memref_slice %arg11[%37, %c0_i32_37, %c0_i32_38] : memref<2x32x128xf32, #tpu.memory_space<vmem>> -> memref<1x32x128xf32, #tpu.memory_space<vmem>>
      %45 = tpu.memref_squeeze %44 : memref<1x32x128xf32, #tpu.memory_space<vmem>> -> memref<32x128xf32, #tpu.memory_space<vmem>>
      %46 = tpu.memref_slice %arg13[%37] : memref<2x!tpu.dma_semaphore, #tpu.memory_space<semaphore_mem>> -> memref<1x!tpu.dma_semaphore, #tpu.memory_space<semaphore_mem>>
      %47 = tpu.memref_squeeze %46 : memref<1x!tpu.dma_semaphore, #tpu.memory_space<semaphore_mem>> -> memref<!tpu.dma_semaphore, #tpu.memory_space<semaphore_mem>>
      tpu.wait_dma2 semaphore(%47 : memref<!tpu.dma_semaphore, #tpu.memory_space<semaphore_mem>>) src(%43 : memref<32x128xf32, #tpu.memory_space<vmem>>) dst(%45 : memref<32x128xf32, #tpu.memory_space<vmem>>)
      %48 = arith.index_cast %37 : i32 to index
      %c0_39 = arith.constant 0 : index
      %c0_40 = arith.constant 0 : index
      %49 = vector.load %arg11[%48, %c0_39, %c0_40] : memref<2x32x128xf32, #tpu.memory_space<vmem>>, vector<1x32x128xf32>
      %50 = vector.shape_cast %49 : vector<1x32x128xf32> to vector<32x128xf32>
      %cst_41 = arith.constant dense<0.000000e+00> : vector<32xf32>
      %51 = vector.multi_reduction <add>, %50, %cst_41 [1] : vector<32x128xf32> to vector<32xf32>
      %52 = vector.shape_cast %51 : vector<32xf32> to vector<32x1xf32>
      %cst_42 = arith.constant 3.125000e-02 : f32
      %53 = vector.broadcast %cst_42 : f32 to vector<32x1xf32>
      %54 = arith.mulf %52, %53 : vector<32x1xf32>
      %55 = vector.broadcast %54 : vector<32x1xf32> to vector<32x128xf32>
      %56 = arith.subf %50, %55 : vector<32x128xf32>
      %57 = arith.mulf %56, %56 : vector<32x128xf32>
      %58 = vector.broadcast %27 : vector<1x128xf32> to vector<32x128xf32>
      %59 = arith.mulf %57, %58 : vector<32x128xf32>
      %cst_43 = arith.constant dense<0.000000e+00> : vector<32xf32>
      %60 = vector.multi_reduction <add>, %59, %cst_43 [1] : vector<32x128xf32> to vector<32xf32>
      %61 = vector.shape_cast %60 : vector<32xf32> to vector<32x1xf32>
      %cst_44 = arith.constant 3.125000e-02 : f32
      %62 = vector.broadcast %cst_44 : f32 to vector<32x1xf32>
      %63 = arith.mulf %61, %62 : vector<32x1xf32>
      %cst_45 = arith.constant 9.99999974E-6 : f32
      %64 = vector.broadcast %cst_45 : f32 to vector<32x1xf32>
      %65 = arith.addf %63, %64 : vector<32x1xf32>
      %66 = math.rsqrt %65 : vector<32x1xf32>
      %67 = vector.broadcast %66 : vector<32x1xf32> to vector<32x128xf32>
      %68 = arith.mulf %56, %67 : vector<32x128xf32>
      %69 = vector.shape_cast %20 : vector<128xf32> to vector<1x128xf32>
      %70 = vector.broadcast %69 : vector<1x128xf32> to vector<32x128xf32>
      %71 = arith.mulf %68, %70 : vector<32x128xf32>
      %72 = vector.shape_cast %22 : vector<128xf32> to vector<1x128xf32>
      %73 = vector.broadcast %72 : vector<1x128xf32> to vector<32x128xf32>
      %74 = arith.addf %71, %73 : vector<32x128xf32>
      %75 = vector.shape_cast %74 : vector<32x128xf32> to vector<4x8x128xf32>
      %76 = arith.index_cast %36 : i32 to index
      %c0_46 = arith.constant 0 : index
      %c0_47 = arith.constant 0 : index
      %77 = vector.load %arg3[%76, %c0_46, %c0_47] : memref<2x4x8xf32, #tpu.memory_space<vmem>>, vector<1x4x8xf32>
      %78 = vector.shape_cast %77 : vector<1x4x8xf32> to vector<4x8xf32>
      %cst_48 = arith.constant dense<0.000000e+00> : vector<4xf32>
      %79 = vector.multi_reduction <add>, %78, %cst_48 [1] : vector<4x8xf32> to vector<4xf32>
      %80 = vector.shape_cast %79 : vector<4xf32> to vector<4x1xf32>
      %cst_49 = arith.constant 1.000000e+00 : f32
      %81 = vector.broadcast %cst_49 : f32 to vector<4x1xf32>
      %82 = arith.maximumf %80, %81 : vector<4x1xf32>
      %83 = vector.shape_cast %78 : vector<4x8xf32> to vector<4x8x1xf32>
      %84 = vector.broadcast %83 : vector<4x8x1xf32> to vector<4x8x128xf32>
      %85 = arith.mulf %75, %84 : vector<4x8x128xf32>
      %cst_50 = arith.constant dense<0.000000e+00> : vector<4x128xf32>
      %86 = vector.multi_reduction <add>, %85, %cst_50 [1] : vector<4x8x128xf32> to vector<4x128xf32>
      %87 = vector.broadcast %82 : vector<4x1xf32> to vector<4x128xf32>
      %88 = arith.divf %86, %87 : vector<4x128xf32>
      %89 = arith.index_cast %36 : i32 to index
      %c0_51 = arith.constant 0 : index
      %c0_52 = arith.constant 0 : index
      %90 = vector.load %arg12[%89, %c0_51, %c0_52] : memref<2x4x128xf32, #tpu.memory_space<vmem>>, vector<1x4x128xf32>
      %91 = vector.shape_cast %90 : vector<1x4x128xf32> to vector<4x128xf32>
      %92 = vector.shape_cast %88 : vector<4x128xf32> to vector<1x4x128xf32>
      tpu.vector_store %arg12[%89, %c0_51, %c0_52], %92 {strides = array<i32>} : memref<2x4x128xf32, #tpu.memory_space<vmem>>, vector<1x4x128xf32>,
    }
    %c2_i32_20 = arith.constant 2 : i32
    %c0_21 = arith.constant 0 : index
    %c0_22 = arith.constant 0 : index
    %c0_23 = arith.constant 0 : index
    %29 = vector.load %arg12[%c0_21, %c0_22, %c0_23] : memref<2x4x128xf32, #tpu.memory_space<vmem>>, vector<2x4x128xf32>
    %30 = vector.shape_cast %29 : vector<2x4x128xf32> to vector<8x128xf32>
    %c0_24 = arith.constant 0 : index
    %c0_25 = arith.constant 0 : index
    %31 = vector.load %arg9[%c0_24, %c0_25] : memref<128x128xf32, #tpu.memory_space<vmem>>, vector<128x128xf32>
    %cst_26 = arith.constant dense<0.000000e+00> : vector<8x128xf32>
    %32 = tpu.matmul %30, %31, %cst_26 {dimension_numbers = #tpu.dot_dimension_numbers<[1], [0], [0], [1], [0, 0, 1, 1], [], []>} : vector<8x128xf32>, vector<128x128xf32>, vector<8x128xf32> -> vector<8x128xf32>
    %33 = vector.shape_cast %32 : vector<8x128xf32> to vector<2x4x128xf32>
    %c0_27 = arith.constant 0 : index
    %c4 = arith.constant 4 : index
    %c0_28 = arith.constant 0 : index
    %34 = vector.load %arg10[%c0_27, %c4, %c0_28] : memref<2x8x128xf32, #tpu.memory_space<vmem>>, vector<2x4x128xf32>
    tpu.vector_store %arg10[%c0_27, %c4, %c0_28], %33 {strides = array<i32>} : memref<2x8x128xf32, #tpu.memory_space<vmem>>, vector<2x4x128xf32>,
    return
  }
  func.func @transform_1(%arg0: i32, %arg1: memref<128xi32, #tpu.memory_space<smem>>) -> (i32, i32, i32) {
    %c0_i32 = arith.constant 0 : i32
    %c0_i32_0 = arith.constant 0 : i32
    %c0_i32_1 = arith.constant 0 : i32
    return %arg0, %c0_i32, %c0_i32_0 : i32, i32, i32
  }
  func.func @transform_2(%arg0: i32, %arg1: memref<128xi32, #tpu.memory_space<smem>>) -> (i32, i32, i32) {
    %c0_i32 = arith.constant 0 : i32
    %c0_i32_0 = arith.constant 0 : i32
    %c0_i32_1 = arith.constant 0 : i32
    return %arg0, %c0_i32, %c0_i32_0 : i32, i32, i32
  }
  func.func @transform_3(%arg0: i32, %arg1: memref<128xi32, #tpu.memory_space<smem>>) -> (i32, i32) {
    %c0_i32 = arith.constant 0 : i32
    %c0_i32_0 = arith.constant 0 : i32
    %c0_i32_1 = arith.constant 0 : i32
    return %c0_i32, %c0_i32_0 : i32, i32
  }
  func.func @transform_4(%arg0: i32, %arg1: memref<128xi32, #tpu.memory_space<smem>>) -> (i32, i32) {
    %c0_i32 = arith.constant 0 : i32
    %c0_i32_0 = arith.constant 0 : i32
    %c0_i32_1 = arith.constant 0 : i32
    return %c0_i32, %c0_i32_0 : i32, i32
  }
  func.func @transform_5(%arg0: i32, %arg1: memref<128xi32, #tpu.memory_space<smem>>) -> (i32, i32) {
    %c0_i32 = arith.constant 0 : i32
    %c0_i32_0 = arith.constant 0 : i32
    %c0_i32_1 = arith.constant 0 : i32
    return %c0_i32, %c0_i32_0 : i32, i32
  }
  func.func @transform_6(%arg0: i32, %arg1: memref<128xi32, #tpu.memory_space<smem>>) -> (i32, i32) {
    %c0_i32 = arith.constant 0 : i32
    %c0_i32_0 = arith.constant 0 : i32
    %c0_i32_1 = arith.constant 0 : i32
    return %c0_i32, %c0_i32_0 : i32, i32
  }
  func.func @transform_7(%arg0: i32, %arg1: memref<128xi32, #tpu.memory_space<smem>>) -> (i32, i32) {
    %c0_i32 = arith.constant 0 : i32
    %c0_i32_0 = arith.constant 0 : i32
    %c0_i32_1 = arith.constant 0 : i32
    return %c0_i32, %c0_i32_0 : i32, i32
  }
  func.func @transform_8(%arg0: i32, %arg1: memref<128xi32, #tpu.memory_space<smem>>) -> (i32, i32, i32) {
    %c0_i32 = arith.constant 0 : i32
    %c0_i32_0 = arith.constant 0 : i32
    %c0_i32_1 = arith.constant 0 : i32
    return %arg0, %c0_i32, %c0_i32_0 : i32, i32, i32
  }
}

</mosaic_0001>

<llo_original>
// kernel: tpu_custom_call.1
$region0: #{tpu_custom_call.1}
  #allocation0 [shape = 'u32[]', space=smem, size = 0x4, offset = 0x4, fixed_abs, tag = 'smem constant byte address 0x4 - core index']
  #allocation1 [shape = 'u32[144,128]{1,0:T(1,128)}', space=vmem, size = 0x12000, scoped, tag = 'internal scratch']
  #allocation2 [shape = 'f32[2,32,128]{2,1,0:T(8,128)}', space=vmem, size = 0x8000, scoped, tag = 'scratch operand']
  #allocation3 [shape = 'f32[2,4,128]{2,1,0:T(4,128)}', space=vmem, size = 0x1000, scoped, tag = 'scratch operand']
  #allocation4 [shape = 's32[2]{0}', space=sflag, size = 0x8, scoped, tag = 'scratch operand']
  #allocation5 [shape = 's32[1]{0}', space=sflag, size = 0x4, scoped, tag = 'scoped memory for tpu_custom_call.1']
  #allocation6 [shape = 'u8[512]{0}', space=smem, size = 0x200, scoped, tag = 'prefetched SMEM operand 0']
  #allocation11 [shape = 's32[]', space=sflag, size = 0x4, offset = 0, fixed_abs, tag = 'sflag constant byte address 0x0 - dummy sync flag']
  #allocation12 [shape = 's32[]', space=sflag, size = 0x4, offset = 0, fixed_abs, tag = 'sflag constant byte address 0x0 - dummy sync flag']
  #allocation13 [shape = 'u32[]', space=smem, size = 0x4, offset = 0x44, fixed_abs, tag = 'smem constant byte address 0x44 - assertion arg 0']
  #allocation14 [shape = 'u32[]', space=smem, size = 0x4, offset = 0x48, fixed_abs, tag = 'smem constant byte address 0x48 - assertion arg 1']
  #allocation15 [shape = 's32[]', space=sflag, size = 0x4, offset = 0, fixed_abs, tag = 'sflag constant byte address 0x0 - dummy sync flag']
  #allocation16 [shape = 's32[]', space=sflag, size = 0x4, offset = 0, fixed_abs, tag = 'sflag constant byte address 0x0 - dummy sync flag']
  %s0 = inlined_call_operand.vmem [shape: s32[128], index: 0, kind: input, shape index: {}]
  %s1 = inlined_call_operand.hbm [shape: f32[64,128], index: 1, kind: input, shape index: {}]
  %s2 = inlined_call_operand.vmem [shape: f32[4,4,8], index: 2, kind: input, shape index: {}]
  %s3 = inlined_call_operand.vmem [shape: f32[4,4,1], index: 3, kind: input, shape index: {}]
  %s4 = inlined_call_operand.vmem [shape: f32[4,128], index: 4, kind: input, shape index: {}]
  %s5 = inlined_call_operand.vmem [shape: f32[1,128], index: 5, kind: input, shape index: {}]
  %s6 = inlined_call_operand.vmem [shape: f32[1,128], index: 6, kind: input, shape index: {}]
  %s7 = inlined_call_operand.vmem [shape: f32[1,128], index: 7, kind: input, shape index: {}]
  %s8 = inlined_call_operand.hbm [shape: f32[128,128], index: 8, kind: input, shape index: {}]
  %s9 = inlined_call_operand.hbm [shape: f32[4,8,128], index: 9, kind: output, shape index: {}]
  %s10 = sld [smem:[#allocation0]]
  $region98: #{tpu_custom_call.1} parent=0
    _
  %s12 = ssub.s32 1, %s10
  %s13 = scalar_select 0, %s12, %s10
  %s14 = sshll.u32 %s0, 4
  %s15 = int_to_ptr.vmem [resolvable:$true] %s14
  %17 = dma.vmem_to_smem %s15, 16, [#allocation6], [#allocation5]
  %18 = dma.done [#allocation5], 16
  %19 = sfence
  $region1: #{tpu_custom_call.1} parent=0
    #allocation7 [shape = 'u8[65536]{0}', space=vmem, size = 0x10000, scoped, tag = 'input window, operand 8, single buffered']
    #allocation8 [shape = 's32[2]{0}', space=sflag, size = 0x8, scoped, tag = 'scoped memory for tpu_custom_call.1']
    #allocation9 [shape = 's32[2]{0}', space=sflag, size = 0x8, scoped, tag = 'scoped memory for tpu_custom_call.1']
    #allocation10 [shape = 'u8[16384]{0}', space=vmem, size = 0x4000, scoped, tag = 'output window, operand 0']
    %20 = vsyncpa [#allocation8], 0
    %21 = vsyncpa [#allocation9], 0
    %s22 = scalar_lea.sflag [#allocation9], 1
    %23 = vsyncpa %s22, 0
    loop: start=0, step=1, limit=4
    $region2: #{tpu_custom_call.1} parent=1 // loop_pre_header
      _
    $region3: #{tpu_custom_call.1} parent=1 // loop_header
      %s25 = sphi 0, %s29
      %p26 = scmp.ge.s32.totalorder %s25, 4
      %s35 = sphi 0, %s37
      %s38 = sphi 0, %s35
      %s39 = sphi 0, %s38
      %s55 = sphi 0, %s39
      %s61 = sphi 0, %s63
      %s64 = sphi 0, %s61
      %s65 = sphi 0, %s64
      %s81 = sphi 0, %s65
      %s85 = sphi 0, %s85
      %s87 = sphi 0, %s85
      %s88 = sphi 0, %s87
      %s102 = sphi 0, %s88
      %s106 = sphi 0, %s106
      %s108 = sphi 0, %s106
      %s109 = sphi 0, %s108
      %s123 = sphi 0, %s109
      %s127 = sphi 0, %s127
      %s129 = sphi 0, %s127
      %s130 = sphi 0, %s129
      %s144 = sphi 0, %s130
      %s148 = sphi 0, %s148
      %s150 = sphi 0, %s148
      %s151 = sphi 0, %s150
      %s165 = sphi 0, %s151
      %s169 = sphi 0, %s169
      %s171 = sphi 0, %s169
      %s172 = sphi 0, %s171
      %s186 = sphi 0, %s172
      %s192 = sphi 0, %s194
      %s195 = sphi 0, %s192
      %s196 = sphi 0, %s195
      %s212 = sphi 0, %s196
    $region4: #{tpu_custom_call.1} parent=1 // loop_header_branch
      %28 = sbr.rel (%p26) target = $region8
    $region5: #{tpu_custom_call.1} parent=1 // loop_body
      %s30 = ssub.s32 %s25, 1
      %s31 = ssub.s32 %s25, 2
      %s32 = sadd.s32 %s25, 1
      %s33 = ssub.s32 %s25, %s32
      %p34 = scmp.eq.s32.totalorder %s33, 0
      %s36 = sadd.s32 %s35, 1
      %s37 = scalar_select %p34, %s35, %s36
      %p40 = pneg %p34
      %p41 = scmp.eq.s32.totalorder %s25, 1
      %p42 = por %p40, %p41
      %p43 = scmp.ne.s32.totalorder %s35, %s38
      %p44 = scmp.eq.s32.totalorder %s25, 0
      %p45 = por %p43, %p44
      %p46 = scmp.ne.s32.totalorder %s35, %s38
      %p47 = scmp.eq.s32.totalorder %s30, 1
      %p48 = por %p46, %p47
      %p49 = scmp.ne.s32.totalorder %s38, %s39
      %p50 = scmp.eq.s32.totalorder %s30, 0
      %p51 = por %p49, %p50
      %p52 = scmp.ne.s32.totalorder %s38, %s39
      %p53 = scmp.eq.s32.totalorder %s31, 1
      %p54 = por %p52, %p53
      %p56 = scmp.ne.s32.totalorder %s39, %s55
      %p57 = scmp.eq.s32.totalorder %s31, 0
      %p58 = por %p56, %p57
      %s59 = ssub.s32 %s25, %s32
      %p60 = scmp.eq.s32.totalorder %s59, 0
      %s62 = sadd.s32 %s61, 1
      %s63 = scalar_select %p60, %s61, %s62
      %p66 = pneg %p60
      %p67 = scmp.eq.s32.totalorder %s25, 1
      %p68 = por %p66, %p67
      %p69 = scmp.ne.s32.totalorder %s61, %s64
      %p70 = scmp.eq.s32.totalorder %s25, 0
      %p71 = por %p69, %p70
      %p72 = scmp.ne.s32.totalorder %s61, %s64
      %p73 = scmp.eq.s32.totalorder %s30, 1
      %p74 = por %p72, %p73
      %p75 = scmp.ne.s32.totalorder %s64, %s65
      %p76 = scmp.eq.s32.totalorder %s30, 0
      %p77 = por %p75, %p76
      %p78 = scmp.ne.s32.totalorder %s64, %s65
      %p79 = scmp.eq.s32.totalorder %s31, 1
      %p80 = por %p78, %p79
      %p82 = scmp.ne.s32.totalorder %s65, %s81
      %p83 = scmp.eq.s32.totalorder %s31, 0
      %p84 = por %p82, %p83
      %s86 = sadd.s32 %s85, 1
      %p89 = scmp.eq.s32.totalorder %s25, 1
      %p90 = scmp.ne.s32.totalorder %s85, %s87
      %p91 = scmp.eq.s32.totalorder %s25, 0
      %p92 = por %p90, %p91
      %p93 = scmp.ne.s32.totalorder %s85, %s87
      %p94 = scmp.eq.s32.totalorder %s30, 1
      %p95 = por %p93, %p94
      %p96 = scmp.ne.s32.totalorder %s87, %s88
      %p97 = scmp.eq.s32.totalorder %s30, 0
      %p98 = por %p96, %p97
      %p99 = scmp.ne.s32.totalorder %s87, %s88
      %p100 = scmp.eq.s32.totalorder %s31, 1
      %p101 = por %p99, %p100
      %p103 = scmp.ne.s32.totalorder %s88, %s102
      %p104 = scmp.eq.s32.totalorder %s31, 0
      %p105 = por %p103, %p104
      %s107 = sadd.s32 %s106, 1
      %p110 = scmp.eq.s32.totalorder %s25, 1
      %p111 = scmp.ne.s32.totalorder %s106, %s108
      %p112 = scmp.eq.s32.totalorder %s25, 0
      %p113 = por %p111, %p112
      %p114 = scmp.ne.s32.totalorder %s106, %s108
      %p115 = scmp.eq.s32.totalorder %s30, 1
      %p116 = por %p114, %p115
      %p117 = scmp.ne.s32.totalorder %s108, %s109
      %p118 = scmp.eq.s32.totalorder %s30, 0
      %p119 = por %p117, %p118
      %p120 = scmp.ne.s32.totalorder %s108, %s109
      %p121 = scmp.eq.s32.totalorder %s31, 1
      %p122 = por %p120, %p121
      %p124 = scmp.ne.s32.totalorder %s109, %s123
      %p125 = scmp.eq.s32.totalorder %s31, 0
      %p126 = por %p124, %p125
      %s128 = sadd.s32 %s127, 1
      %p131 = scmp.eq.s32.totalorder %s25, 1
      %p132 = scmp.ne.s32.totalorder %s127, %s129
      %p133 = scmp.eq.s32.totalorder %s25, 0
      %p134 = por %p132, %p133
      %p135 = scmp.ne.s32.totalorder %s127, %s129
      %p136 = scmp.eq.s32.totalorder %s30, 1
      %p137 = por %p135, %p136
      %p138 = scmp.ne.s32.totalorder %s129, %s130
      %p139 = scmp.eq.s32.totalorder %s30, 0
      %p140 = por %p138, %p139
      %p141 = scmp.ne.s32.totalorder %s129, %s130
      %p142 = scmp.eq.s32.totalorder %s31, 1
      %p143 = por %p141, %p142
      %p145 = scmp.ne.s32.totalorder %s130, %s144
      %p146 = scmp.eq.s32.totalorder %s31, 0
      %p147 = por %p145, %p146
      %s149 = sadd.s32 %s148, 1
      %p152 = scmp.eq.s32.totalorder %s25, 1
      %p153 = scmp.ne.s32.totalorder %s148, %s150
      %p154 = scmp.eq.s32.totalorder %s25, 0
      %p155 = por %p153, %p154
      %p156 = scmp.ne.s32.totalorder %s148, %s150
      %p157 = scmp.eq.s32.totalorder %s30, 1
      %p158 = por %p156, %p157
      %p159 = scmp.ne.s32.totalorder %s150, %s151
      %p160 = scmp.eq.s32.totalorder %s30, 0
      %p161 = por %p159, %p160
      %p162 = scmp.ne.s32.totalorder %s150, %s151
      %p163 = scmp.eq.s32.totalorder %s31, 1
      %p164 = por %p162, %p163
      %p166 = scmp.ne.s32.totalorder %s151, %s165
      %p167 = scmp.eq.s32.totalorder %s31, 0
      %p168 = por %p166, %p167
      %s170 = sadd.s32 %s169, 1
      %p173 = scmp.eq.s32.totalorder %s25, 1
      %p174 = scmp.ne.s32.totalorder %s169, %s171
      %p175 = scmp.eq.s32.totalorder %s25, 0
      %p176 = por %p174, %p175
      %p177 = scmp.ne.s32.totalorder %s169, %s171
      %p178 = scmp.eq.s32.totalorder %s30, 1
      %p179 = por %p177, %p178
      %p180 = scmp.ne.s32.totalorder %s171, %s172
      %p181 = scmp.eq.s32.totalorder %s30, 0
      %p182 = por %p180, %p181
      %p183 = scmp.ne.s32.totalorder %s171, %s172
      %p184 = scmp.eq.s32.totalorder %s31, 1
      %p185 = por %p183, %p184
      %p187 = scmp.ne.s32.totalorder %s172, %s186
      %p188 = scmp.eq.s32.totalorder %s31, 0
      %p189 = por %p187, %p188
      %s190 = ssub.s32 %s25, %s32
      %p191 = scmp.eq.s32.totalorder %s190, 0
      %s193 = sadd.s32 %s192, 1
      %s194 = scalar_select %p191, %s192, %s193
      %p197 = pneg %p191
      %p198 = scmp.eq.s32.totalorder %s25, 1
      %p199 = por %p197, %p198
      %p200 = scmp.ne.s32.totalorder %s192, %s195
      %p201 = scmp.eq.s32.totalorder %s25, 0
      %p202 = por %p200, %p201
      %p203 = scmp.ne.s32.totalorder %s192, %s195
      %p204 = scmp.eq.s32.totalorder %s30, 1
      %p205 = por %p203, %p204
      %p206 = scmp.ne.s32.totalorder %s195, %s196
      %p207 = scmp.eq.s32.totalorder %s30, 0
      %p208 = por %p206, %p207
      %p209 = scmp.ne.s32.totalorder %s195, %s196
      %p210 = scmp.eq.s32.totalorder %s31, 1
      %p211 = por %p209, %p210
      %p213 = scmp.ne.s32.totalorder %s196, %s212
      %p214 = scmp.eq.s32.totalorder %s31, 0
      %p215 = por %p213, %p214
      %p216 = scmp.le.s32.totalorder 1, %s25
      %p217 = scmp.lt.s32.totalorder %s25, 3
      %p218 = pnand %p216, %p217
      %p219 = pneg %p218
      // Predicated region
      $region9: #{tpu_custom_call.1} parent=5 // pred_check
        _
      $region10: #{tpu_custom_call.1} parent=5 // pred_check_branch
        %221 = sbr.rel (%p218) target = $region12
      $region11: #{tpu_custom_call.1} parent=5 // pred_region
        %s222 = ssub.s32 %s25, 1
        // Predicated region
        $region13: #{tpu_custom_call.1} parent=11 // pred_check
          %p223 = pneg %p98
        $region14: #{tpu_custom_call.1} parent=11 // pred_check_branch
          %225 = sbr.rel (%p223) target = $region16
        $region15: #{tpu_custom_call.1} parent=11 // pred_region
          _
        $region16: #{tpu_custom_call.1} parent=11 // pred_fallthru
          _
        // Predicated region
        $region17: #{tpu_custom_call.1} parent=11 // pred_check
          %p226 = pneg %p119
        $region18: #{tpu_custom_call.1} parent=11 // pred_check_branch
          %228 = sbr.rel (%p226) target = $region20
        $region19: #{tpu_custom_call.1} parent=11 // pred_region
          _
        $region20: #{tpu_custom_call.1} parent=11 // pred_fallthru
          _
        // Predicated region
        $region21: #{tpu_custom_call.1} parent=11 // pred_check
          %p229 = pneg %p140
        $region22: #{tpu_custom_call.1} parent=11 // pred_check_branch
          %231 = sbr.rel (%p229) target = $region24
        $region23: #{tpu_custom_call.1} parent=11 // pred_region
          _
        $region24: #{tpu_custom_call.1} parent=11 // pred_fallthru
          _
        // Predicated region
        $region25: #{tpu_custom_call.1} parent=11 // pred_check
          %p232 = pneg %p161
        $region26: #{tpu_custom_call.1} parent=11 // pred_check_branch
          %234 = sbr.rel (%p232) target = $region28
        $region27: #{tpu_custom_call.1} parent=11 // pred_region
          _
        $region28: #{tpu_custom_call.1} parent=11 // pred_fallthru
          _
        // Predicated region
        $region29: #{tpu_custom_call.1} parent=11 // pred_check
          %p235 = pneg %p182
        $region30: #{tpu_custom_call.1} parent=11 // pred_check_branch
          %237 = sbr.rel (%p235) target = $region32
        $region31: #{tpu_custom_call.1} parent=11 // pred_region
          %s239 = ssub.s32 2048, 2048
          %240 = vsyncadd [#allocation8], %s239
          %s241 = sshll.u32 [#allocation7], 4
          %s242 = int_to_ptr.vmem [resolvable:$true] %s241
          %247 = dma.hbm_to_vmem [thread:$0]  %s8, 2048, %s242, [#allocation8], 128, 128, 8
        $region32: #{tpu_custom_call.1} parent=11 // pred_fallthru
          _
      $region12: #{tpu_custom_call.1} parent=5 // pred_fallthru
        _
      %p248 = scmp.lt.s32.totalorder %s25, 2
      // Predicated region
      $region33: #{tpu_custom_call.1} parent=5 // pred_check
        %p249 = pneg %p248
      $region34: #{tpu_custom_call.1} parent=5 // pred_check_branch
        %251 = sbr.rel (%p249) target = $region36
      $region35: #{tpu_custom_call.1} parent=5 // pred_region
        // Predicated region
        $region37: #{tpu_custom_call.1} parent=35 // pred_check
          %p252 = pneg %p45
        $region38: #{tpu_custom_call.1} parent=35 // pred_check_branch
          %254 = sbr.rel (%p252) target = $region40
        $region39: #{tpu_custom_call.1} parent=35 // pred_region
          %s255 = smul.u32 2, %s25
          %p256 = scmp.lt.s32.totalorder %s255, 3
          %s257 = scalar_select %p256, %s255, 3
          %s258 = smul.addr %s257, 4
          %s259 = scalar_lea.vmem %s2, %s258
          %s260 = smul.u32 2, %s25
        $region40: #{tpu_custom_call.1} parent=35 // pred_fallthru
          _
        // Predicated region
        $region41: #{tpu_custom_call.1} parent=35 // pred_check
          %p261 = pneg %p71
        $region42: #{tpu_custom_call.1} parent=35 // pred_check_branch
          %263 = sbr.rel (%p261) target = $region44
        $region43: #{tpu_custom_call.1} parent=35 // pred_region
          %s264 = smul.u32 2, %s25
          %p265 = scmp.lt.s32.totalorder %s264, 3
          %s266 = scalar_select %p265, %s264, 3
          %s267 = smul.addr %s266, 4
          %s268 = scalar_lea.vmem %s3, %s267
          %s269 = smul.u32 2, %s25
        $region44: #{tpu_custom_call.1} parent=35 // pred_fallthru
          _
      $region36: #{tpu_custom_call.1} parent=5 // pred_fallthru
        _
      %p270 = scmp.le.s32.totalorder 1, %s25
      %p271 = scmp.lt.s32.totalorder %s25, 3
      %p272 = pnand %p270, %p271
      %p273 = pneg %p272
      // Predicated region
      $region45: #{tpu_custom_call.1} parent=5 // pred_check
        _
      $region46: #{tpu_custom_call.1} parent=5 // pred_check_branch
        %275 = sbr.rel (%p272) target = $region48
      $region47: #{tpu_custom_call.1} parent=5 // pred_region
        %s276 = ssub.s32 %s25, 1
        // Predicated region
        $region49: #{tpu_custom_call.1} parent=47 // pred_check
          %p277 = pneg %p182
        $region50: #{tpu_custom_call.1} parent=47 // pred_check_branch
          %279 = sbr.rel (%p277) target = $region52
        $region51: #{tpu_custom_call.1} parent=47 // pred_region
          %280 = dma.done [#allocation8], 2048
        $region52: #{tpu_custom_call.1} parent=47 // pred_fallthru
          _
        %s281 = smul.u32 2, %s30
        %p282 = scmp.lt.s32.totalorder %s281, 3
        %s283 = scalar_select %p282, %s281, 3
        %s284 = smul.addr %s283, 4
        %s285 = scalar_lea.vmem %s2, %s284
        %p286 = pneg %p51
        %p287 = pneg %p48
        %s288 = smul.u32 2, %s30
        %p289 = scmp.lt.s32.totalorder %s288, 3
        %s290 = scalar_select %p289, %s288, 3
        %s291 = smul.addr %s290, 4
        %s292 = scalar_lea.vmem %s3, %s291
        %p293 = pneg %p77
        %p294 = pneg %p74
        %p295 = pneg %p98
        %p296 = pneg %p95
        %p297 = pneg %p119
        %p298 = pneg %p116
        %p299 = pneg %p140
        %p300 = pneg %p137
        %p301 = pneg %p161
        %p302 = pneg %p158
        %p303 = pneg %p182
        %p304 = pneg %p179
        %p305 = pneg %p208
        %p306 = pneg %p205
        %s307 = sand.u32 %s195, 1
        %s308 = scalar_lea.sflag [#allocation9], %s307
        %s309 = sand.u32 %s195, 1
        %s310 = smul.addr %s309, 16
        %s311 = scalar_lea.vmem [#allocation10], %s310
        %s312 = smul.u32 2, %s30
        %p313 = scmp.lt.s32.totalorder %s312, 3
        %s314 = scalar_select %p313, %s312, 3
        %s315 = smul.addr %s314, 4
        %s316 = scalar_lea.vmem %s2, %s315
        %s317 = smul.u32 2, %s30
        %s318 = smul.u32 2, %s30
        %p319 = scmp.lt.s32.totalorder %s318, 3
        %s320 = scalar_select %p319, %s318, 3
        %s321 = smul.addr %s320, 4
        %s322 = scalar_lea.vmem %s3, %s321
        %s323 = smul.u32 2, %s30
        %s324 = smul.u32 2, %s30
        %s325 = smul.u32 %s30, 64
        loop: start=0, step=1, limit=32
        $region53: #{tpu_custom_call.1} parent=47 // loop_pre_header
          _
        $region54: #{tpu_custom_call.1} parent=47 // loop_header
          %s327 = sphi 0, %s331
          %p328 = scmp.ge.s32.totalorder %s327, 32
        $region55: #{tpu_custom_call.1} parent=47 // loop_header_branch
          %330 = sbr.rel (%p328) target = $region59
        $region56: #{tpu_custom_call.1} parent=47 // loop_body
          %s332 = sadd.s32 %s325, %s327
          %s333 = sld [smem:[#allocation6 + %s332]]
          %s334 = smul.addr %s333, 16
          %s335 = scalar_lea.hbm %s1, %s334
          %s336 = scalar_lea.vmem [#allocation2], %s327
          // Predicated region
          $region60: #{tpu_custom_call.1} parent=56 // pred_check
            _
          $region61: #{tpu_custom_call.1} parent=56 // pred_check_branch
            %338 = sbr.rel target = $region63
          $region62: #{tpu_custom_call.1} parent=56 // pred_region
            %339 = sst [smem:[#allocation13]] [#allocation12]
            %340 = sst [smem:[#allocation14]] [#allocation11]
          $region63: #{tpu_custom_call.1} parent=56 // pred_fallthru
            _
          %342 = shalt.err (0)
          %s344 = sshll.u32 %s336, 4
          %s345 = int_to_ptr.vmem [resolvable:$true] %s344
          %347 = dma.hbm_to_vmem [thread:$0]  %s335, 16, %s345, [#allocation4]
        $region57: #{tpu_custom_call.1} parent=47 // loop_footer
          %s331 = sadd.s32 1, %s327
        $region58: #{tpu_custom_call.1} parent=47 // loop_footer_branch
          %326 = sbr.rel target = $region54
        $region59: #{tpu_custom_call.1} parent=47 // loop_exit
          _
        %v348 = vld [vmem:[%s4] sm:$0xf]
        %v349 = vld [vmem:[%s322] sm:$0xf]
        %v350 = vld [vmem:[%s322 + $0x4] sm:$0xf]
        %352 = vset.pattern.permute.xlu0 0
        %353 = vperm.xlu0 %352, %v349
        %v354 = vpop.permute.xlu0 %353
        %357 = vset.pattern.permute.xlu0 0
        %358 = vperm.xlu0 %357, %v350
        %v359 = vpop.permute.xlu0 %358
        %v361 = vmul.f32 %v348, %v354
        %v362 = vmul.f32 %v348, %v359
        %v363 = vld [vmem:[%s5] sm:$0x1]
        %v365 = vlaneseq
        %v366 = vshrl.u32 %v365, 7
        %v367 = vsub.s32 0, %v366
        %v368 = vrot.slane %v363, %v367
        %v370 = vadd.f32 %v361, %v368
        %v371 = vadd.f32 %v362, %v368
        %v372 = vld [vmem:[#allocation7] sm:$0xff]
        %v373 = vld [vmem:[#allocation7 + $0x8] sm:$0xff]
        %v374 = vld [vmem:[#allocation7 + $0x10] sm:$0xff]
        %v375 = vld [vmem:[#allocation7 + $0x18] sm:$0xff]
        %v376 = vld [vmem:[#allocation7 + $0x20] sm:$0xff]
        %v377 = vld [vmem:[#allocation7 + $0x28] sm:$0xff]
        %v378 = vld [vmem:[#allocation7 + $0x30] sm:$0xff]
        %v379 = vld [vmem:[#allocation7 + $0x38] sm:$0xff]
        %v380 = vld [vmem:[#allocation7 + $0x40] sm:$0xff]
        %v381 = vld [vmem:[#allocation7 + $0x48] sm:$0xff]
        %v382 = vld [vmem:[#allocation7 + $0x50] sm:$0xff]
        %v383 = vld [vmem:[#allocation7 + $0x58] sm:$0xff]
        %v384 = vld [vmem:[#allocation7 + $0x60] sm:$0xff]
        %v385 = vld [vmem:[#allocation7 + $0x68] sm:$0xff]
        %v386 = vld [vmem:[#allocation7 + $0x70] sm:$0xff]
        %v387 = vld [vmem:[#allocation7 + $0x78] sm:$0xff]
        %v390 = vcombine.low %v370, %v371
        %392 = vmatprep.subr.mxu0 0.0
        %393 = vmatpush1.msra.mxu0 %v372
        %394 = vmatprep.subr.mxu0 0.0
        %395 = vmatpush1.msra.mxu0 %v373
        %396 = vmatprep.subr.mxu0 0.0
        %397 = vmatpush1.msra.mxu0 %v374
        %398 = vmatprep.subr.mxu0 0.0
        %399 = vmatpush1.msra.mxu0 %v375
        %400 = vmatprep.subr.mxu0 0.0
        %401 = vmatpush1.msra.mxu0 %v376
        %402 = vmatprep.subr.mxu0 0.0
        %403 = vmatpush1.msra.mxu0 %v377
        %404 = vmatprep.subr.mxu0 0.0
        %405 = vmatpush1.msra.mxu0 %v378
        %406 = vmatprep.subr.mxu0 0.0
        %407 = vmatpush1.msra.mxu0 %v379
        %408 = vmatprep.subr.mxu0 0.0
        %409 = vmatpush1.msra.mxu0 %v380
        %410 = vmatprep.subr.mxu0 0.0
        %411 = vmatpush1.msra.mxu0 %v381
        %412 = vmatprep.subr.mxu0 0.0
        %413 = vmatpush1.msra.mxu0 %v382
        %414 = vmatprep.subr.mxu0 0.0
        %415 = vmatpush1.msra.mxu0 %v383
        %416 = vmatprep.subr.mxu0 0.0
        %417 = vmatpush1.msra.mxu0 %v384
        %418 = vmatprep.subr.mxu0 0.0
        %419 = vmatpush1.msra.mxu0 %v385
        %420 = vmatprep.subr.mxu0 0.0
        %421 = vmatpush1.msra.mxu0 %v386
        %422 = vmatprep.subr.mxu0 0.0
        %423 = vmatpush1.msra.mxu0 %v387
        %424 = vmatprep.subr.mxu0 0.0
        %425 = vmatpush1.msra.mxu0 0.0
        %426 = vmatprep.subr.mxu0 0.0
        %427 = vmatpush1.msra.mxu0 0.0
        %428 = vmatprep.subr.mxu0 0.0
        %429 = vmatpush1.msra.mxu0 0.0
        %430 = vmatprep.subr.mxu0 0.0
        %431 = vmatpush1.msra.mxu0 0.0
        %432 = vmatprep.subr.mxu0 0.0
        %433 = vmatpush1.msra.mxu0 0.0
        %434 = vmatprep.subr.mxu0 0.0
        %435 = vmatpush1.msra.mxu0 0.0
        %436 = vmatprep.subr.mxu0 0.0
        %437 = vmatpush1.msra.mxu0 0.0
        %438 = vmatprep.subr.mxu0 0.0
        %439 = vmatpush1.msra.mxu0 0.0
        %440 = vmatprep.subr.mxu0 0.0
        %441 = vmatpush1.msra.mxu0 0.0
        %442 = vmatprep.subr.mxu0 0.0
        %443 = vmatpush1.msra.mxu0 0.0
        %444 = vmatprep.subr.mxu0 0.0
        %445 = vmatpush1.msra.mxu0 0.0
        %446 = vmatprep.subr.mxu0 0.0
        %447 = vmatpush1.msra.mxu0 0.0
        %448 = vmatprep.subr.mxu0 0.0
        %449 = vmatpush1.msra.mxu0 0.0
        %450 = vmatprep.subr.mxu0 0.0
        %451 = vmatpush1.msra.mxu0 0.0
        %452 = vmatprep.subr.mxu0 0.0
        %453 = vmatpush1.msra.mxu0 0.0
        %454 = vmatprep.subr.mxu0 0.0
        %455 = vmatpush1.msra.mxu0 0.0
        %456 = vmatprep.mubr.f32.mxu0 0.0
        %457 = vmatmul.mubr.f32.gmra.mrb[0].mxu0 %v390
        %v458 = vpop.f32.mrb[0].mxu0
        %v459 = vadd.f32 0.0, %v458
        %v460 = vpop.f32.mrb[0].mxu0
        %461 = vdwg.mxu0
        %v463 = vcombine.high %v459, %v459
        %465 = vst [vmem:[%s311] sm:$0xf] %v459
        %466 = vst [vmem:[%s311 + $0x8] sm:$0xf] %v463
        %v467 = vld [vmem:[%s6] sm:$0x1]
        %v468 = vld [vmem:[%s7] sm:$0x1]
        %v469 = vlaneseq
        %v470 = vand.u32 %v469, 127
        %vm471 = vcmp.lt.s32.totalorder %v470, 32
        %v472 = vsel %vm471, 1, 0
        %v473 = vcvt.s32.f32 %v472
        loop: start=0, step=1, limit=2
        $region64: #{tpu_custom_call.1} parent=47 // loop_pre_header
          _
        $region65: #{tpu_custom_call.1} parent=47 // loop_header
          %s475 = sphi 0, %s479
          %p476 = scmp.ge.s32.totalorder %s475, 2
        $region66: #{tpu_custom_call.1} parent=47 // loop_header_branch
          %478 = sbr.rel (%p476) target = $region70
        $region67: #{tpu_custom_call.1} parent=47 // loop_body
          %s480 = sand.u32 %s475, 1
          %s481 = sadd.s32 %s475, 1
          %p482 = scmp.lt.s32.totalorder %s481, 2
          // Predicated region
          $region71: #{tpu_custom_call.1} parent=67 // pred_check
            %p483 = pneg %p482
          $region72: #{tpu_custom_call.1} parent=67 // pred_check_branch
            %485 = sbr.rel (%p483) target = $region74
          $region73: #{tpu_custom_call.1} parent=67 // pred_region
            %s486 = sand.u32 %s481, 1
            %s487 = smul.u32 %s481, 32
            %s488 = sadd.s32 %s325, %s487
            loop: start=0, step=1, limit=32
            $region75: #{tpu_custom_call.1} parent=73 // loop_pre_header
              _
            $region76: #{tpu_custom_call.1} parent=73 // loop_header
              %s490 = sphi 0, %s494
              %p491 = scmp.ge.s32.totalorder %s490, 32
            $region77: #{tpu_custom_call.1} parent=73 // loop_header_branch
              %493 = sbr.rel (%p491) target = $region81
            $region78: #{tpu_custom_call.1} parent=73 // loop_body
              %s495 = sadd.s32 %s488, %s490
              %s496 = sld [smem:[#allocation6 + %s495]]
              %s497 = smul.addr %s496, 16
              %s498 = scalar_lea.hbm %s1, %s497
              %s499 = smul.u32 %s486, 32
              %s500 = sadd.s32 %s490, %s499
              %s501 = scalar_lea.vmem [#allocation2], %s500
              %s502 = scalar_lea.sflag [#allocation4], %s486
              // Predicated region
              $region82: #{tpu_custom_call.1} parent=78 // pred_check
                _
              $region83: #{tpu_custom_call.1} parent=78 // pred_check_branch
                %504 = sbr.rel target = $region85
              $region84: #{tpu_custom_call.1} parent=78 // pred_region
                %505 = sst [smem:[#allocation13]] [#allocation16]
                %506 = sst [smem:[#allocation14]] [#allocation15]
              $region85: #{tpu_custom_call.1} parent=78 // pred_fallthru
                _
              %508 = shalt.err (0)
              %s510 = sshll.u32 %s501, 4
              %s511 = int_to_ptr.vmem [resolvable:$true] %s510
              %513 = dma.hbm_to_vmem [thread:$0]  %s498, 16, %s511, %s502
            $region79: #{tpu_custom_call.1} parent=73 // loop_footer
              %s494 = sadd.s32 1, %s490
            $region80: #{tpu_custom_call.1} parent=73 // loop_footer_branch
              %489 = sbr.rel target = $region76
            $region81: #{tpu_custom_call.1} parent=73 // loop_exit
              _
          $region74: #{tpu_custom_call.1} parent=67 // pred_fallthru
            _
          %s514 = smul.u32 %s480, 32
          %s515 = scalar_lea.vmem [#allocation2], %s514
          %s516 = scalar_lea.sflag [#allocation4], %s480
          %s517 = smul.u32 32, 1
          %s518 = sshll.u32 %s517, 4
          %519 = dma.done %s516, %s518
          %v520 = vld [vmem:[%s515] sm:$0xff]
          %v521 = vld [vmem:[%s515 + $0x8] sm:$0xff]
          %v522 = vld [vmem:[%s515 + $0x10] sm:$0xff]
          %v523 = vld [vmem:[%s515 + $0x18] sm:$0xff]
          %524 = vadd.xlane.f32.xlu0 %v520
          %v525 = vpop.xlane.xlu0 %524
          %526 = vadd.xlane.f32.xlu0 %v521
          %v527 = vpop.xlane.xlu0 %526
          %528 = vadd.xlane.f32.xlu0 %v522
          %v529 = vpop.xlane.xlu0 %528
          %530 = vadd.xlane.f32.xlu0 %v523
          %v531 = vpop.xlane.xlu0 %530
          %v532 = vmul.f32 %v525, 0.03125
          %v533 = vmul.f32 %v527, 0.03125
          %v534 = vmul.f32 %v529, 0.03125
          %v535 = vmul.f32 %v531, 0.03125
          %v536 = vsub.f32 %v520, %v532
          %v537 = vsub.f32 %v521, %v533
          %v538 = vsub.f32 %v522, %v534
          %v539 = vsub.f32 %v523, %v535
          %v540 = vmul.f32 %v536, %v536
          %v541 = vmul.f32 %v537, %v537
          %v542 = vmul.f32 %v538, %v538
          %v543 = vmul.f32 %v539, %v539
          %v544 = vmul.f32 %v540, %v473
          %v545 = vmul.f32 %v541, %v473
          %v546 = vmul.f32 %v542, %v473
          %v547 = vmul.f32 %v543, %v473
          %548 = vadd.xlane.f32.xlu0 %v544
          %v549 = vpop.xlane.xlu0 %548
          %550 = vadd.xlane.f32.xlu0 %v545
          %v551 = vpop.xlane.xlu0 %550
          %552 = vadd.xlane.f32.xlu0 %v546
          %v553 = vpop.xlane.xlu0 %552
          %554 = vadd.xlane.f32.xlu0 %v547
          %v555 = vpop.xlane.xlu0 %554
          %v556 = vmul.f32 %v549, 0.03125
          %v557 = vmul.f32 %v551, 0.03125
          %v558 = vmul.f32 %v553, 0.03125
          %v559 = vmul.f32 %v555, 0.03125
          %v560 = vadd.f32 %v556, 1e-05
          %v561 = vadd.f32 %v557, 1e-05
          %v562 = vadd.f32 %v558, 1e-05
          %v563 = vadd.f32 %v559, 1e-05
          %v564 = vrsqrt.pop %v560
          %v565 = vrsqrt.pop %v561
          %v566 = vrsqrt.pop %v562
          %v567 = vrsqrt.pop %v563
          %v568 = vmul.f32 %v536, %v564
          %v569 = vmul.f32 %v537, %v565
          %v570 = vmul.f32 %v538, %v566
          %v571 = vmul.f32 %v539, %v567
          %v573 = vlaneseq
          %v574 = vshrl.u32 %v573, 7
          %v575 = vsub.s32 0, %v574
          %v576 = vrot.slane %v467, %v575
          %v578 = vmul.f32 %v568, %v576
          %v579 = vmul.f32 %v569, %v576
          %v580 = vmul.f32 %v570, %v576
          %v581 = vmul.f32 %v571, %v576
          %v583 = vlaneseq
          %v584 = vshrl.u32 %v583, 7
          %v585 = vsub.s32 0, %v584
          %v586 = vrot.slane %v468, %v585
          %v588 = vadd.f32 %v578, %v586
          %v589 = vadd.f32 %v579, %v586
          %v590 = vadd.f32 %v580, %v586
          %v591 = vadd.f32 %v581, %v586
          %s592 = smul.u32 %s475, 4
          %s593 = scalar_lea.vmem %s316, %s592
          %v594 = vld [vmem:[%s593] sm:$0xf]
          %vm595 = vcmask 60416
          %v596 = vsel %vm595, %v594, 0.0
          %597 = vadd.xlane.f32.xlu0 %v596
          %v598 = vpop.xlane.xlu0 %597
          %v599 = vmax.f32 %v598, 1.0
          %v600 = vlaneseq
          %v601 = vshrl.u32 %v600, 7
          %v602 = vsub.s32 0, %v601
          %v603 = vrot.slane %v594, %v602
          %605 = vbcast.lane.b32.xlu0 %v603, 256
          %v606 = vpop.permute.xlu0 %605
          %v607 = vlaneseq
          %v608 = vshrl.u32 %v607, 7
          %v609 = vsub.s32 1, %v608
          %v610 = vrot.slane %v594, %v609
          %612 = vbcast.lane.b32.xlu0 %v610, 256
          %v613 = vpop.permute.xlu0 %612
          %v614 = vlaneseq
          %v615 = vshrl.u32 %v614, 7
          %v616 = vsub.s32 2, %v615
          %v617 = vrot.slane %v594, %v616
          %619 = vbcast.lane.b32.xlu0 %v617, 256
          %v620 = vpop.permute.xlu0 %619
          %v621 = vlaneseq
          %v622 = vshrl.u32 %v621, 7
          %v623 = vsub.s32 3, %v622
          %v624 = vrot.slane %v594, %v623
          %626 = vbcast.lane.b32.xlu0 %v624, 256
          %v627 = vpop.permute.xlu0 %626
          %v628 = vmul.f32 %v588, %v606
          %v629 = vmul.f32 %v589, %v613
          %v630 = vmul.f32 %v590, %v620
          %v631 = vmul.f32 %v591, %v627
          %v632 = vrot.slane %v628, 4
          %v633 = vadd.f32 %v628, %v632
          %v634 = vrot.slane %v633, 2
          %v635 = vadd.f32 %v633, %v634
          %v636 = vrot.slane %v635, 1
          %v637 = vadd.f32 %v635, %v636
          %v638 = vrot.slane %v629, 4
          %v639 = vadd.f32 %v629, %v638
          %v640 = vrot.slane %v639, 2
          %v641 = vadd.f32 %v639, %v640
          %v642 = vrot.slane %v641, 1
          %v643 = vadd.f32 %v641, %v642
          %v644 = vrot.slane %v630, 4
          %v645 = vadd.f32 %v630, %v644
          %v646 = vrot.slane %v645, 2
          %v647 = vadd.f32 %v645, %v646
          %v648 = vrot.slane %v647, 1
          %v649 = vadd.f32 %v647, %v648
          %v650 = vrot.slane %v631, 4
          %v651 = vadd.f32 %v631, %v650
          %v652 = vrot.slane %v651, 2
          %v653 = vadd.f32 %v651, %v652
          %v654 = vrot.slane %v653, 1
          %v655 = vadd.f32 %v653, %v654
          %v657 = vrot.slane %v599, 1
          %v658 = vrot.slane %v599, 2
          %v659 = vrot.slane %v599, 3
          %v664 = vrcp.pop %v599
          %v665 = vmul.f32 %v637, %v664
          %v666 = vrcp.pop %v657
          %v667 = vmul.f32 %v643, %v666
          %v668 = vrcp.pop %v658
          %v669 = vmul.f32 %v649, %v668
          %v670 = vrcp.pop %v659
          %v671 = vmul.f32 %v655, %v670
          %v676 = vrot.slane %v667, 7
          %vm677 = vcmask 1041409
          %v678 = vsel %vm677, %v676, %v665
          %v679 = vrot.slane %v669, 6
          %vm680 = vcmask 1042434
          %v681 = vsel %vm680, %v679, %v678
          %v682 = vrot.slane %v671, 5
          %vm683 = vcmask 1043459
          %v684 = vsel %vm683, %v682, %v681
          %s686 = scalar_lea.vmem [#allocation3], %s592
          %687 = vst [vmem:[%s686] sm:$0xf] %v684
        $region68: #{tpu_custom_call.1} parent=47 // loop_footer
          %s479 = sadd.s32 1, %s475
        $region69: #{tpu_custom_call.1} parent=47 // loop_footer_branch
          %474 = sbr.rel target = $region65
        $region70: #{tpu_custom_call.1} parent=47 // loop_exit
          _
        %v688 = vld [vmem:[#allocation3] sm:$0xf]
        %v689 = vld [vmem:[#allocation3 + $0x4] sm:$0xf]
        %v690 = vld [vmem:[#allocation7] sm:$0xff]
        %v691 = vld [vmem:[#allocation7 + $0x8] sm:$0xff]
        %v692 = vld [vmem:[#allocation7 + $0x10] sm:$0xff]
        %v693 = vld [vmem:[#allocation7 + $0x18] sm:$0xff]
        %v694 = vld [vmem:[#allocation7 + $0x20] sm:$0xff]
        %v695 = vld [vmem:[#allocation7 + $0x28] sm:$0xff]
        %v696 = vld [vmem:[#allocation7 + $0x30] sm:$0xff]
        %v697 = vld [vmem:[#allocation7 + $0x38] sm:$0xff]
        %v698 = vld [vmem:[#allocation7 + $0x40] sm:$0xff]
        %v699 = vld [vmem:[#allocation7 + $0x48] sm:$0xff]
        %v700 = vld [vmem:[#allocation7 + $0x50] sm:$0xff]
        %v701 = vld [vmem:[#allocation7 + $0x58] sm:$0xff]
        %v702 = vld [vmem:[#allocation7 + $0x60] sm:$0xff]
        %v703 = vld [vmem:[#allocation7 + $0x68] sm:$0xff]
        %v704 = vld [vmem:[#allocation7 + $0x70] sm:$0xff]
        %v705 = vld [vmem:[#allocation7 + $0x78] sm:$0xff]
        %v708 = vcombine.low %v688, %v689
        %710 = vmatprep.subr.mxu0 0.0
        %711 = vmatpush1.msra.mxu0 %v690
        %712 = vmatprep.subr.mxu0 0.0
        %713 = vmatpush1.msra.mxu0 %v691
        %714 = vmatprep.subr.mxu0 0.0
        %715 = vmatpush1.msra.mxu0 %v692
        %716 = vmatprep.subr.mxu0 0.0
        %717 = vmatpush1.msra.mxu0 %v693
        %718 = vmatprep.subr.mxu0 0.0
        %719 = vmatpush1.msra.mxu0 %v694
        %720 = vmatprep.subr.mxu0 0.0
        %721 = vmatpush1.msra.mxu0 %v695
        %722 = vmatprep.subr.mxu0 0.0
        %723 = vmatpush1.msra.mxu0 %v696
        %724 = vmatprep.subr.mxu0 0.0
        %725 = vmatpush1.msra.mxu0 %v697
        %726 = vmatprep.subr.mxu0 0.0
        %727 = vmatpush1.msra.mxu0 %v698
        %728 = vmatprep.subr.mxu0 0.0
        %729 = vmatpush1.msra.mxu0 %v699
        %730 = vmatprep.subr.mxu0 0.0
        %731 = vmatpush1.msra.mxu0 %v700
        %732 = vmatprep.subr.mxu0 0.0
        %733 = vmatpush1.msra.mxu0 %v701
        %734 = vmatprep.subr.mxu0 0.0
        %735 = vmatpush1.msra.mxu0 %v702
        %736 = vmatprep.subr.mxu0 0.0
        %737 = vmatpush1.msra.mxu0 %v703
        %738 = vmatprep.subr.mxu0 0.0
        %739 = vmatpush1.msra.mxu0 %v704
        %740 = vmatprep.subr.mxu0 0.0
        %741 = vmatpush1.msra.mxu0 %v705
        %742 = vmatprep.subr.mxu0 0.0
        %743 = vmatpush1.msra.mxu0 0.0
        %744 = vmatprep.subr.mxu0 0.0
        %745 = vmatpush1.msra.mxu0 0.0
        %746 = vmatprep.subr.mxu0 0.0
        %747 = vmatpush1.msra.mxu0 0.0
        %748 = vmatprep.subr.mxu0 0.0
        %749 = vmatpush1.msra.mxu0 0.0
        %750 = vmatprep.subr.mxu0 0.0
        %751 = vmatpush1.msra.mxu0 0.0
        %752 = vmatprep.subr.mxu0 0.0
        %753 = vmatpush1.msra.mxu0 0.0
        %754 = vmatprep.subr.mxu0 0.0
        %755 = vmatpush1.msra.mxu0 0.0
        %756 = vmatprep.subr.mxu0 0.0
        %757 = vmatpush1.msra.mxu0 0.0
        %758 = vmatprep.subr.mxu0 0.0
        %759 = vmatpush1.msra.mxu0 0.0
        %760 = vmatprep.subr.mxu0 0.0
        %761 = vmatpush1.msra.mxu0 0.0
        %762 = vmatprep.subr.mxu0 0.0
        %763 = vmatpush1.msra.mxu0 0.0
        %764 = vmatprep.subr.mxu0 0.0
        %765 = vmatpush1.msra.mxu0 0.0
        %766 = vmatprep.subr.mxu0 0.0
        %767 = vmatpush1.msra.mxu0 0.0
        %768 = vmatprep.subr.mxu0 0.0
        %769 = vmatpush1.msra.mxu0 0.0
        %770 = vmatprep.subr.mxu0 0.0
        %771 = vmatpush1.msra.mxu0 0.0
        %772 = vmatprep.subr.mxu0 0.0
        %773 = vmatpush1.msra.mxu0 0.0
        %774 = vmatprep.mubr.f32.mxu0 0.0
        %775 = vmatmul.mubr.f32.gmra.mrb[0].mxu0 %v708
        %v776 = vpop.f32.mrb[0].mxu0
        %v777 = vadd.f32 0.0, %v776
        %v778 = vpop.f32.mrb[0].mxu0
        %779 = vdwg.mxu0
        %v781 = vcombine.high %v777, %v777
        %783 = vst [vmem:[%s311 + $0x4] sm:$0xf] %v777
        %784 = vst [vmem:[%s311 + $0xc] sm:$0xf] %v781
        %s785 = sand.u32 %s195, 1
        %s786 = scalar_lea.sflag [#allocation9], %s785
        %s787 = sand.u32 %s195, 1
        %s788 = smul.addr %s787, 16
        %s789 = scalar_lea.vmem [#allocation10], %s788
        // Predicated region
        $region86: #{tpu_custom_call.1} parent=47 // pred_check
          %p790 = pneg %p205
        $region87: #{tpu_custom_call.1} parent=47 // pred_check_branch
          %792 = sbr.rel (%p790) target = $region89
        $region88: #{tpu_custom_call.1} parent=47 // pred_region
          %s793 = smul.u32 2, %s30
          %s795 = ssub.s32 256, 256
          %796 = vsyncadd %s786, %s795
          %s797 = smul.addr %s793, 128
          %s798 = scalar_lea.hbm %s9, %s797
          %s799 = sshll.u32 %s789, 4
          %s800 = int_to_ptr.vmem [resolvable:$true] %s799
          %805 = dma.vmem_to_hbm [thread:$0]  %s800, 256, %s798, %s786, 128, 128, 8
        $region89: #{tpu_custom_call.1} parent=47 // pred_fallthru
          _
      $region48: #{tpu_custom_call.1} parent=5 // pred_fallthru
        _
      %p806 = scmp.le.s32.totalorder 2, %s25
      // Predicated region
      $region90: #{tpu_custom_call.1} parent=5 // pred_check
        %p807 = pneg %p806
      $region91: #{tpu_custom_call.1} parent=5 // pred_check_branch
        %809 = sbr.rel (%p807) target = $region93
      $region92: #{tpu_custom_call.1} parent=5 // pred_region
        %s810 = ssub.s32 %s25, 2
        // Predicated region
        $region94: #{tpu_custom_call.1} parent=92 // pred_check
          %p811 = pneg %p211
        $region95: #{tpu_custom_call.1} parent=92 // pred_check_branch
          %813 = sbr.rel (%p811) target = $region97
        $region96: #{tpu_custom_call.1} parent=92 // pred_region
          %s814 = sand.u32 %s196, 1
          %s815 = scalar_lea.sflag [#allocation9], %s814
          %s816 = sand.u32 %s196, 1
          %s817 = smul.addr %s816, 16
          %s818 = scalar_lea.vmem [#allocation10], %s817
          %819 = dma.done %s815, 256
        $region97: #{tpu_custom_call.1} parent=92 // pred_fallthru
          _
      $region93: #{tpu_custom_call.1} parent=5 // pred_fallthru
        _
    $region6: #{tpu_custom_call.1} parent=1 // loop_footer
      %s29 = sadd.s32 1, %s25
    $region7: #{tpu_custom_call.1} parent=1 // loop_footer_branch
      %24 = sbr.rel target = $region3
    $region8: #{tpu_custom_call.1} parent=1 // loop_exit
      _
    %820 = vsyncpa [#allocation8], 1
    %s821 = scalar_lea.sflag [#allocation8], 1
    %822 = vsyncpa %s821, 1
    %823 = vsyncpa [#allocation9], 1
    %s824 = scalar_lea.sflag [#allocation9], 1
    %825 = vsyncpa %s824, 1
  %826 = vsyncmov [#allocation4]
  %s827 = vpop.sfrf %826
  %p828 = scmp.eq.s32.totalorder %s827, 0
  %p829 = pneg %p828
  %831 = shalt.err (%p829)
  %s832 = scalar_lea.sflag [#allocation4], 1
  %833 = vsyncmov %s832
  %s834 = vpop.sfrf %833
  %p835 = scmp.eq.s32.totalorder %s834, 0
  %p836 = pneg %p835
  %838 = shalt.err (%p836)

</llo_original>
